<compile_context>
chip_gen: v6e
topology: v6e:2x2x1
jax: 0.10.0
libtpu: 0.0.40
codegen_flags: <defaults>
</compile_context>

<pallas_src>
import jax
import jax.numpy as jnp
from jax.experimental import pallas as pl
from jax.experimental.pallas import tpu as pltpu


def ffnn_kernel(x_ref, w1_ref, b1_ref, w2_ref, b2_ref, out_ref):
    """One batch tile: out = sigmoid(x @ W1^T + b1) @ W2^T + b2.

    x_ref   : (TB, D_IN)      f32/bf16  activations for this batch tile
    w1_ref  : (D_IN, HIDDEN)  bf16      fc1 weight, pre-transposed
    b1_ref  : (1, HIDDEN)     f32       fc1 bias
    w2_ref  : (HIDDEN, D_OUT) bf16      fc2 weight, pre-transposed
    b2_ref  : (1, D_OUT)      f32       fc2 bias
    out_ref : (TB, D_OUT)     f32
    """
    # fc1 on the MXU (bf16 operands, f32 accumulation); bias add in f32.
    x = x_ref[...].astype(jnp.bfloat16)  # no-op if x is already bf16
    z1 = jnp.dot(x, w1_ref[...], preferred_element_type=jnp.float32)
    z1 = z1 + b1_ref[...]

    # Sigmoid: exp on the EUP, approximate reciprocal also on the EUP (vrcp).
    h = pl.reciprocal(1.0 + jnp.exp(-z1), approx=True)

    # fc2 on the MXU, bias add in f32, lane-dense (TB, D_OUT) store.
    z2 = jnp.dot(h.astype(jnp.bfloat16), w2_ref[...],
                 preferred_element_type=jnp.float32)
    out_ref[...] = z2 + b2_ref[...]


def prepare_ffnn_params(w1, b1, w2, b2):
    """One-time (model-init) weight prep so no transpose/cast runs per forward.

    w1: (H, D_IN), b1: (H,), w2: (D_OUT, H), b2: (D_OUT,)  — PyTorch layout.
    """
    return {
        "w1t": w1.T.astype(jnp.bfloat16),                 # (D_IN, HIDDEN)
        "b1r": b1.reshape(1, -1).astype(jnp.float32),     # (1, HIDDEN)
        "w2t": w2.T.astype(jnp.bfloat16),                 # (HIDDEN, D_OUT)
        "b2r": b2.reshape(1, -1).astype(jnp.float32),     # (1, D_OUT)
    }


def _round_up(n, m):
    return ((n + m - 1) // m) * m


def _pick_batch_tile(batch, max_tile=512):
    # Big tiles for the mem-bound stream over x, but keep >=2 grid steps when
    # the batch allows so both v7x TensorCores get work.  Tile rows stay a
    # multiple of 8 (sublane constraint); the partial last block is masked.
    return min(max_tile, max(8, _round_up(pl.cdiv(batch, 2), 8)))


def ffnn_forward(x, params, *, max_block_b=512):
    """x: (B, D_IN) float32 (or bfloat16).  Returns (B, D_OUT) float32."""
    B, d_in = x.shape
    w1t, b1r, w2t, b2r = params["w1t"], params["b1r"], params["w2t"], params["b2r"]
    h_dim = w1t.shape[1]
    d_out = w2t.shape[1]

    TB = _pick_batch_tile(B, max_block_b)
    n_tiles = pl.cdiv(B, TB)

    return pl.pallas_call(
        ffnn_kernel,
        out_shape=jax.ShapeDtypeStruct((B, d_out), jnp.float32),
        grid=(n_tiles,),
        in_specs=[
            pl.BlockSpec((TB, d_in), lambda i: (i, 0)),       # x tile (streamed)
            pl.BlockSpec((d_in, h_dim), lambda i: (0, 0)),    # W1^T (resident)
            pl.BlockSpec((1, h_dim), lambda i: (0, 0)),       # b1   (resident)
            pl.BlockSpec((h_dim, d_out), lambda i: (0, 0)),   # W2^T (resident)
            pl.BlockSpec((1, d_out), lambda i: (0, 0)),       # b2   (resident)
        ],
        out_specs=pl.BlockSpec((TB, d_out), lambda i: (i, 0)),
        compiler_params=pltpu.CompilerParams(
            dimension_semantics=("parallel",)),
    )(x, w1t, b1r, w2t, b2r)


def ffnn_reference(x, w1, b1, w2, b2):
    """Pure-JAX f32 reference matching the PyTorch forward."""
    h = jax.nn.sigmoid(x @ w1.T + b1)
    return h @ w2.T + b2


if __name__ == "__main__":
    key = jax.random.PRNGKey(0)
    kx, k1, k2, k3, k4 = jax.random.split(key, 5)

    # Small shapes consistent with the module; B deliberately not a multiple
    # of 8 * n_tiles to exercise the masked partial last block and the
    # >=2-tile (v7x megacore) path: TB = 104, grid = (2,).
    B, D_IN, HIDDEN, D_OUT = 200, 128, 64, 16

    x = jax.random.normal(kx, (B, D_IN), jnp.float32)

    # PyTorch-default-style init: U(-1/sqrt(fan_in), +1/sqrt(fan_in)).
    bound1 = 1.0 / D_IN ** 0.5
    w1 = jax.random.uniform(k1, (HIDDEN, D_IN), jnp.float32, -bound1, bound1)
    b1 = jax.random.uniform(k2, (HIDDEN,), jnp.float32, -bound1, bound1)
    bound2 = 1.0 / HIDDEN ** 0.5
    w2 = jax.random.uniform(k3, (D_OUT, HIDDEN), jnp.float32, -bound2, bound2)
    b2 = jax.random.uniform(k4, (D_OUT,), jnp.float32, -bound2, bound2)

    params = prepare_ffnn_params(w1, b1, w2, b2)   # one-time weight prep
    fwd = jax.jit(ffnn_forward)

    out = jax.block_until_ready(fwd(x, params))
    ref = jax.block_until_ready(ffnn_reference(x, w1, b1, w2, b2))

    assert out.shape == (B, D_OUT), out.shape
    # Tolerance covers bf16 MXU operands (f32 accumulation) + the ~2^-12
    # approx-reciprocal error; observed error is ~1e-3 absolute at this scale.
    assert jnp.allclose(out, ref, atol=2e-2, rtol=2e-2), (
        float(jnp.max(jnp.abs(out - ref))))
    print("KERNEL_OK")
</pallas_src>

<mosaic_0001>
module attributes {stable_mosaic.version = 11 : i64} {
  func.func @ffnn_kernel(%arg0: i32, %arg1: memref<104x128xf32, #tpu.memory_space<vmem>>, %arg2: memref<128x64xbf16, #tpu.memory_space<vmem>>, %arg3: memref<1x64xf32, #tpu.memory_space<vmem>>, %arg4: memref<64x16xbf16, #tpu.memory_space<vmem>>, %arg5: memref<1x16xf32, #tpu.memory_space<vmem>>, %arg6: memref<104x16xf32, #tpu.memory_space<vmem>>) attributes {dimension_semantics = [#tpu.dimension_semantics<parallel>], iteration_bounds = array<i64: 2>, scalar_prefetch = 0 : i64, scratch_operands = 0 : i64, tpu.core_type = #tpu.core_type<tc>, window_params = [{transform_indices = @transform_0, window_bounds = array<i64: 104, 128>}, {pipeline_mode = #tpu.pipeline_mode<synchronous>, transform_indices = @transform_1, window_bounds = array<i64: 128, 64>}, {pipeline_mode = #tpu.pipeline_mode<synchronous>, transform_indices = @transform_2, window_bounds = array<i64: 1, 64>}, {pipeline_mode = #tpu.pipeline_mode<synchronous>, transform_indices = @transform_3, window_bounds = array<i64: 64, 16>}, {pipeline_mode = #tpu.pipeline_mode<synchronous>, transform_indices = @transform_4, window_bounds = array<i64: 1, 16>}, {transform_indices = @transform_5, window_bounds = array<i64: 104, 16>}]} {
    %c0 = arith.constant 0 : index
    %c0_0 = arith.constant 0 : index
    %0 = vector.load %arg1[%c0, %c0_0] : memref<104x128xf32, #tpu.memory_space<vmem>>, vector<104x128xf32>
    %1 = arith.truncf %0 : vector<104x128xf32> to vector<104x128xbf16>
    %c0_1 = arith.constant 0 : index
    %c0_2 = arith.constant 0 : index
    %2 = vector.load %arg2[%c0_1, %c0_2] : memref<128x64xbf16, #tpu.memory_space<vmem>>, vector<128x64xbf16>
    %cst = arith.constant dense<0.000000e+00> : vector<104x64xf32>
    %3 = tpu.matmul %1, %2, %cst {dimension_numbers = #tpu.dot_dimension_numbers<[1], [0], [0], [1], [0, 0, 1, 1], [], []>} : vector<104x128xbf16>, vector<128x64xbf16>, vector<104x64xf32> -> vector<104x64xf32>
    %c0_3 = arith.constant 0 : index
    %c0_4 = arith.constant 0 : index
    %4 = vector.load %arg3[%c0_3, %c0_4] : memref<1x64xf32, #tpu.memory_space<vmem>>, vector<1x64xf32>
    %5 = vector.broadcast %4 : vector<1x64xf32> to vector<104x64xf32>
    %6 = arith.addf %3, %5 : vector<104x64xf32>
    %cst_5 = arith.constant 0.000000e+00 : f32
    %7 = vector.broadcast %cst_5 : f32 to vector<104x64xf32>
    %8 = arith.subf %7, %6 : vector<104x64xf32>
    %9 = math.exp %8 : vector<104x64xf32>
    %cst_6 = arith.constant 1.000000e+00 : f32
    %10 = vector.broadcast %cst_6 : f32 to vector<104x64xf32>
    %11 = arith.addf %10, %9 : vector<104x64xf32>
    %12 = tpu.reciprocal %11 {approx = true} : vector<104x64xf32> -> vector<104x64xf32>
    %13 = arith.truncf %12 : vector<104x64xf32> to vector<104x64xbf16>
    %c0_7 = arith.constant 0 : index
    %c0_8 = arith.constant 0 : index
    %14 = vector.load %arg4[%c0_7, %c0_8] : memref<64x16xbf16, #tpu.memory_space<vmem>>, vector<64x16xbf16>
    %cst_9 = arith.constant dense<0.000000e+00> : vector<104x16xf32>
    %15 = tpu.matmul %13, %14, %cst_9 {dimension_numbers = #tpu.dot_dimension_numbers<[1], [0], [0], [1], [0, 0, 1, 1], [], []>} : vector<104x64xbf16>, vector<64x16xbf16>, vector<104x16xf32> -> vector<104x16xf32>
    %c0_10 = arith.constant 0 : index
    %c0_11 = arith.constant 0 : index
    %16 = vector.load %arg5[%c0_10, %c0_11] : memref<1x16xf32, #tpu.memory_space<vmem>>, vector<1x16xf32>
    %17 = vector.broadcast %16 : vector<1x16xf32> to vector<104x16xf32>
    %18 = arith.addf %15, %17 : vector<104x16xf32>
    %c0_12 = arith.constant 0 : index
    %c0_13 = arith.constant 0 : index
    %19 = vector.load %arg6[%c0_12, %c0_13] : memref<104x16xf32, #tpu.memory_space<vmem>>, vector<104x16xf32>
    tpu.vector_store %arg6[%c0_12, %c0_13], %18 {strides = array<i32>} : memref<104x16xf32, #tpu.memory_space<vmem>>, vector<104x16xf32>,
    return
  }
  func.func @transform_0(%arg0: i32) -> (i32, i32) {
    %c0_i32 = arith.constant 0 : i32
    %c0_i32_0 = arith.constant 0 : i32
    return %arg0, %c0_i32 : i32, i32
  }
  func.func @transform_1(%arg0: i32) -> (i32, i32) {
    %c0_i32 = arith.constant 0 : i32
    %c0_i32_0 = arith.constant 0 : i32
    %c0_i32_1 = arith.constant 0 : i32
    return %c0_i32, %c0_i32_0 : i32, i32
  }
  func.func @transform_2(%arg0: i32) -> (i32, i32) {
    %c0_i32 = arith.constant 0 : i32
    %c0_i32_0 = arith.constant 0 : i32
    %c0_i32_1 = arith.constant 0 : i32
    return %c0_i32, %c0_i32_0 : i32, i32
  }
  func.func @transform_3(%arg0: i32) -> (i32, i32) {
    %c0_i32 = arith.constant 0 : i32
    %c0_i32_0 = arith.constant 0 : i32
    %c0_i32_1 = arith.constant 0 : i32
    return %c0_i32, %c0_i32_0 : i32, i32
  }
  func.func @transform_4(%arg0: i32) -> (i32, i32) {
    %c0_i32 = arith.constant 0 : i32
    %c0_i32_0 = arith.constant 0 : i32
    %c0_i32_1 = arith.constant 0 : i32
    return %c0_i32, %c0_i32_0 : i32, i32
  }
  func.func @transform_5(%arg0: i32) -> (i32, i32) {
    %c0_i32 = arith.constant 0 : i32
    %c0_i32_0 = arith.constant 0 : i32
    return %arg0, %c0_i32 : i32, i32
  }
}

</mosaic_0001>

<llo_original>
// kernel: ffnn_forward.1
$region0: #{ffnn_forward.1}
  #allocation0 [shape = 'u32[]', space=smem, size = 0x4, offset = 0x4, fixed_abs, tag = 'smem constant byte address 0x4 - core index']
  #allocation1 [shape = 'u32[144,128]{1,0:T(1,128)}', space=vmem, size = 0x12000, scoped, tag = 'internal scratch']
  %s0 = inlined_call_operand.hbm [shape: f32[200,128], index: 0, kind: input, shape index: {}]
  %s1 = inlined_call_operand.vmem [shape: bf16[128,64], index: 1, kind: input, shape index: {}]
  %s2 = inlined_call_operand.vmem [shape: f32[1,64], index: 2, kind: input, shape index: {}]
  %s3 = inlined_call_operand.vmem [shape: bf16[64,16], index: 3, kind: input, shape index: {}]
  %s4 = inlined_call_operand.vmem [shape: f32[1,16], index: 4, kind: input, shape index: {}]
  %s5 = inlined_call_operand.vmem [shape: f32[200,16], index: 5, kind: output, shape index: {}]
  %s6 = sld [smem:[#allocation0]]
  $region105: #{ffnn_forward.1} parent=0
    _
  %s8 = ssub.s32 1, %s6
  %s9 = scalar_select 0, %s8, %s6
  $region1: #{ffnn_forward.1} parent=0
    #allocation2 [shape = 'u8[106496]{0}', space=vmem, size = 0x1a000, scoped, tag = 'input window, operand 0']
    #allocation3 [shape = 's32[2]{0}', space=sflag, size = 0x8, scoped, tag = 'scoped memory for ffnn_forward.1']
    #allocation4 [shape = 'u8[106496]{0}', space=vmem, size = 0x1a000, scoped, tag = 'output window, operand 0']
    %10 = vsyncpa [#allocation3], 0
    %s11 = scalar_lea.sflag [#allocation3], 1
    %12 = vsyncpa %s11, 0
    loop: start=0, step=1, limit=4
    $region2: #{ffnn_forward.1} parent=1 // loop_pre_header
      _
    $region3: #{ffnn_forward.1} parent=1 // loop_header
      %s14 = sphi 0, %s18
      %p15 = scmp.ge.s32.totalorder %s14, 4
      %s24 = sphi 0, %s26
      %s27 = sphi 0, %s24
      %s28 = sphi 0, %s27
      %s44 = sphi 0, %s28
      %s48 = sphi 0, %s48
      %s50 = sphi 0, %s48
      %s51 = sphi 0, %s50
      %s65 = sphi 0, %s51
      %s69 = sphi 0, %s69
      %s71 = sphi 0, %s69
      %s72 = sphi 0, %s71
      %s86 = sphi 0, %s72
      %s90 = sphi 0, %s90
      %s92 = sphi 0, %s90
      %s93 = sphi 0, %s92
      %s107 = sphi 0, %s93
      %s111 = sphi 0, %s111
      %s113 = sphi 0, %s111
      %s114 = sphi 0, %s113
      %s128 = sphi 0, %s114
      %s134 = sphi 0, %s136
      %s137 = sphi 0, %s134
      %s138 = sphi 0, %s137
      %s154 = sphi 0, %s138
    $region4: #{ffnn_forward.1} parent=1 // loop_header_branch
      %17 = sbr.rel (%p15) target = $region8
    $region5: #{ffnn_forward.1} parent=1 // loop_body
      %s19 = ssub.s32 %s14, 1
      %s20 = ssub.s32 %s14, 2
      %s21 = sadd.s32 %s14, 1
      %s22 = ssub.s32 %s14, %s21
      %p23 = scmp.eq.s32.totalorder %s22, 0
      %s25 = sadd.s32 %s24, 1
      %s26 = scalar_select %p23, %s24, %s25
      %p29 = pneg %p23
      %p30 = scmp.eq.s32.totalorder %s14, 1
      %p31 = por %p29, %p30
      %p32 = scmp.ne.s32.totalorder %s24, %s27
      %p33 = scmp.eq.s32.totalorder %s14, 0
      %p34 = por %p32, %p33
      %p35 = scmp.ne.s32.totalorder %s24, %s27
      %p36 = scmp.eq.s32.totalorder %s19, 1
      %p37 = por %p35, %p36
      %p38 = scmp.ne.s32.totalorder %s27, %s28
      %p39 = scmp.eq.s32.totalorder %s19, 0
      %p40 = por %p38, %p39
      %p41 = scmp.ne.s32.totalorder %s27, %s28
      %p42 = scmp.eq.s32.totalorder %s20, 1
      %p43 = por %p41, %p42
      %p45 = scmp.ne.s32.totalorder %s28, %s44
      %p46 = scmp.eq.s32.totalorder %s20, 0
      %p47 = por %p45, %p46
      %s49 = sadd.s32 %s48, 1
      %p52 = scmp.eq.s32.totalorder %s14, 1
      %p53 = scmp.ne.s32.totalorder %s48, %s50
      %p54 = scmp.eq.s32.totalorder %s14, 0
      %p55 = por %p53, %p54
      %p56 = scmp.ne.s32.totalorder %s48, %s50
      %p57 = scmp.eq.s32.totalorder %s19, 1
      %p58 = por %p56, %p57
      %p59 = scmp.ne.s32.totalorder %s50, %s51
      %p60 = scmp.eq.s32.totalorder %s19, 0
      %p61 = por %p59, %p60
      %p62 = scmp.ne.s32.totalorder %s50, %s51
      %p63 = scmp.eq.s32.totalorder %s20, 1
      %p64 = por %p62, %p63
      %p66 = scmp.ne.s32.totalorder %s51, %s65
      %p67 = scmp.eq.s32.totalorder %s20, 0
      %p68 = por %p66, %p67
      %s70 = sadd.s32 %s69, 1
      %p73 = scmp.eq.s32.totalorder %s14, 1
      %p74 = scmp.ne.s32.totalorder %s69, %s71
      %p75 = scmp.eq.s32.totalorder %s14, 0
      %p76 = por %p74, %p75
      %p77 = scmp.ne.s32.totalorder %s69, %s71
      %p78 = scmp.eq.s32.totalorder %s19, 1
      %p79 = por %p77, %p78
      %p80 = scmp.ne.s32.totalorder %s71, %s72
      %p81 = scmp.eq.s32.totalorder %s19, 0
      %p82 = por %p80, %p81
      %p83 = scmp.ne.s32.totalorder %s71, %s72
      %p84 = scmp.eq.s32.totalorder %s20, 1
      %p85 = por %p83, %p84
      %p87 = scmp.ne.s32.totalorder %s72, %s86
      %p88 = scmp.eq.s32.totalorder %s20, 0
      %p89 = por %p87, %p88
      %s91 = sadd.s32 %s90, 1
      %p94 = scmp.eq.s32.totalorder %s14, 1
      %p95 = scmp.ne.s32.totalorder %s90, %s92
      %p96 = scmp.eq.s32.totalorder %s14, 0
      %p97 = por %p95, %p96
      %p98 = scmp.ne.s32.totalorder %s90, %s92
      %p99 = scmp.eq.s32.totalorder %s19, 1
      %p100 = por %p98, %p99
      %p101 = scmp.ne.s32.totalorder %s92, %s93
      %p102 = scmp.eq.s32.totalorder %s19, 0
      %p103 = por %p101, %p102
      %p104 = scmp.ne.s32.totalorder %s92, %s93
      %p105 = scmp.eq.s32.totalorder %s20, 1
      %p106 = por %p104, %p105
      %p108 = scmp.ne.s32.totalorder %s93, %s107
      %p109 = scmp.eq.s32.totalorder %s20, 0
      %p110 = por %p108, %p109
      %s112 = sadd.s32 %s111, 1
      %p115 = scmp.eq.s32.totalorder %s14, 1
      %p116 = scmp.ne.s32.totalorder %s111, %s113
      %p117 = scmp.eq.s32.totalorder %s14, 0
      %p118 = por %p116, %p117
      %p119 = scmp.ne.s32.totalorder %s111, %s113
      %p120 = scmp.eq.s32.totalorder %s19, 1
      %p121 = por %p119, %p120
      %p122 = scmp.ne.s32.totalorder %s113, %s114
      %p123 = scmp.eq.s32.totalorder %s19, 0
      %p124 = por %p122, %p123
      %p125 = scmp.ne.s32.totalorder %s113, %s114
      %p126 = scmp.eq.s32.totalorder %s20, 1
      %p127 = por %p125, %p126
      %p129 = scmp.ne.s32.totalorder %s114, %s128
      %p130 = scmp.eq.s32.totalorder %s20, 0
      %p131 = por %p129, %p130
      %s132 = ssub.s32 %s14, %s21
      %p133 = scmp.eq.s32.totalorder %s132, 0
      %s135 = sadd.s32 %s134, 1
      %s136 = scalar_select %p133, %s134, %s135
      %p139 = pneg %p133
      %p140 = scmp.eq.s32.totalorder %s14, 1
      %p141 = por %p139, %p140
      %p142 = scmp.ne.s32.totalorder %s134, %s137
      %p143 = scmp.eq.s32.totalorder %s14, 0
      %p144 = por %p142, %p143
      %p145 = scmp.ne.s32.totalorder %s134, %s137
      %p146 = scmp.eq.s32.totalorder %s19, 1
      %p147 = por %p145, %p146
      %p148 = scmp.ne.s32.totalorder %s137, %s138
      %p149 = scmp.eq.s32.totalorder %s19, 0
      %p150 = por %p148, %p149
      %p151 = scmp.ne.s32.totalorder %s137, %s138
      %p152 = scmp.eq.s32.totalorder %s20, 1
      %p153 = por %p151, %p152
      %p155 = scmp.ne.s32.totalorder %s138, %s154
      %p156 = scmp.eq.s32.totalorder %s20, 0
      %p157 = por %p155, %p156
      %p158 = scmp.le.s32.totalorder 1, %s14
      %p159 = scmp.lt.s32.totalorder %s14, 3
      %p160 = pnand %p158, %p159
      %p161 = pneg %p160
      // Predicated region
      $region9: #{ffnn_forward.1} parent=5 // pred_check
        _
      $region10: #{ffnn_forward.1} parent=5 // pred_check_branch
        %163 = sbr.rel (%p160) target = $region12
      $region11: #{ffnn_forward.1} parent=5 // pred_region
        %s164 = ssub.s32 %s14, 1
        // Predicated region
        $region13: #{ffnn_forward.1} parent=11 // pred_check
          %p165 = pneg %p61
        $region14: #{ffnn_forward.1} parent=11 // pred_check_branch
          %167 = sbr.rel (%p165) target = $region16
        $region15: #{ffnn_forward.1} parent=11 // pred_region
          _
        $region16: #{ffnn_forward.1} parent=11 // pred_fallthru
          _
        // Predicated region
        $region17: #{ffnn_forward.1} parent=11 // pred_check
          %p168 = pneg %p82
        $region18: #{ffnn_forward.1} parent=11 // pred_check_branch
          %170 = sbr.rel (%p168) target = $region20
        $region19: #{ffnn_forward.1} parent=11 // pred_region
          _
        $region20: #{ffnn_forward.1} parent=11 // pred_fallthru
          _
        // Predicated region
        $region21: #{ffnn_forward.1} parent=11 // pred_check
          %p171 = pneg %p103
        $region22: #{ffnn_forward.1} parent=11 // pred_check_branch
          %173 = sbr.rel (%p171) target = $region24
        $region23: #{ffnn_forward.1} parent=11 // pred_region
          _
        $region24: #{ffnn_forward.1} parent=11 // pred_fallthru
          _
        // Predicated region
        $region25: #{ffnn_forward.1} parent=11 // pred_check
          %p174 = pneg %p124
        $region26: #{ffnn_forward.1} parent=11 // pred_check_branch
          %176 = sbr.rel (%p174) target = $region28
        $region27: #{ffnn_forward.1} parent=11 // pred_region
          _
        $region28: #{ffnn_forward.1} parent=11 // pred_fallthru
          _
      $region12: #{ffnn_forward.1} parent=5 // pred_fallthru
        _
      %p177 = scmp.lt.s32.totalorder %s14, 2
      // Predicated region
      $region29: #{ffnn_forward.1} parent=5 // pred_check
        %p178 = pneg %p177
      $region30: #{ffnn_forward.1} parent=5 // pred_check_branch
        %180 = sbr.rel (%p178) target = $region32
      $region31: #{ffnn_forward.1} parent=5 // pred_region
        // Predicated region
        $region33: #{ffnn_forward.1} parent=31 // pred_check
          %p181 = pneg %p34
        $region34: #{ffnn_forward.1} parent=31 // pred_check_branch
          %183 = sbr.rel (%p181) target = $region36
        $region35: #{ffnn_forward.1} parent=31 // pred_region
          %s184 = sand.u32 %s24, 1
          %s185 = scalar_lea.sflag [#allocation3], %s184
          %s186 = sand.u32 %s24, 1
          %s187 = smul.addr %s186, 104
          %s188 = scalar_lea.vmem [#allocation2], %s187
          %s189 = smul.u32 13, %s14
          %s190 = ssub.s32 25, %s189
          %p191 = scmp.lt.s32.totalorder %s190, 13
          %s192 = scalar_select %p191, %s190, 13
          %s193 = smul.u32 128, %s192
          %s195 = ssub.s32 1664, %s193
          %196 = vsyncadd %s185, %s195
          %p197 = scmp.ne.s32.totalorder 0, %s193
          %s198 = smul.addr %s189, 128
          %s199 = scalar_lea.hbm %s0, %s198
          %s200 = smul.u32 8, %s192
          %s201 = sshll.u32 %s188, 4
          %s202 = int_to_ptr.vmem [resolvable:$true] %s201
          %s203 = sshll.u32 %s200, 4
          %207 = dma.hbm_to_vmem [thread:$0]  (%p197), %s199, %s203, %s202, %s185, 128, 128, 8
        $region36: #{ffnn_forward.1} parent=31 // pred_fallthru
          _
      $region32: #{ffnn_forward.1} parent=5 // pred_fallthru
        _
      %p208 = scmp.le.s32.totalorder 1, %s14
      %p209 = scmp.lt.s32.totalorder %s14, 3
      %p210 = pnand %p208, %p209
      %p211 = pneg %p210
      // Predicated region
      $region37: #{ffnn_forward.1} parent=5 // pred_check
        _
      $region38: #{ffnn_forward.1} parent=5 // pred_check_branch
        %213 = sbr.rel (%p210) target = $region40
      $region39: #{ffnn_forward.1} parent=5 // pred_region
        %s214 = ssub.s32 %s14, 1
        %s215 = sand.u32 %s27, 1
        %s216 = scalar_lea.sflag [#allocation3], %s215
        %s217 = sand.u32 %s27, 1
        %s218 = smul.addr %s217, 104
        %s219 = scalar_lea.vmem [#allocation2], %s218
        // Predicated region
        $region41: #{ffnn_forward.1} parent=39 // pred_check
          %p220 = pneg %p40
        $region42: #{ffnn_forward.1} parent=39 // pred_check_branch
          %222 = sbr.rel (%p220) target = $region44
        $region43: #{ffnn_forward.1} parent=39 // pred_region
          %223 = dma.done %s216, 1664
        $region44: #{ffnn_forward.1} parent=39 // pred_fallthru
          _
        %s224 = sand.u32 %s27, 1
        %s225 = scalar_lea.sflag [#allocation3], %s224
        %s226 = sand.u32 %s27, 1
        %s227 = smul.addr %s226, 104
        %s228 = scalar_lea.vmem [#allocation2], %s227
        %p229 = pneg %p40
        %p230 = pneg %p37
        %p231 = pneg %p61
        %p232 = pneg %p58
        %p233 = pneg %p82
        %p234 = pneg %p79
        %p235 = pneg %p103
        %p236 = pneg %p100
        %p237 = pneg %p124
        %p238 = pneg %p121
        %p239 = pneg %p150
        %p240 = pneg %p147
        %s241 = sand.u32 %s137, 1
        %s242 = sand.u32 %s137, 1
        %s243 = smul.addr %s242, 104
        %s244 = scalar_lea.vmem [#allocation4], %s243
        %s245 = smul.u32 13, %s19
        %s246 = ssub.s32 25, %s245
        %p247 = scmp.lt.s32.totalorder %s246, 13
        %s248 = scalar_select %p247, %s246, 13
        %s249 = smul.u32 128, %s248
        %s250 = smul.u32 13, %s19
        %s251 = ssub.s32 25, %s250
        %p252 = scmp.lt.s32.totalorder %s251, 13
        %s253 = scalar_select %p252, %s251, 13
        %s254 = smul.u32 128, %s253
        %v256 = vld [vmem:[%s219] sm:$0xff]
        %v257 = vld [vmem:[%s219 + $0x8] sm:$0xff]
        %v258 = vld [vmem:[%s219 + $0x10] sm:$0xff]
        %v259 = vld [vmem:[%s219 + $0x18] sm:$0xff]
        %v260 = vld [vmem:[%s219 + $0x20] sm:$0xff]
        %v261 = vld [vmem:[%s219 + $0x28] sm:$0xff]
        %v262 = vld [vmem:[%s219 + $0x30] sm:$0xff]
        %v263 = vld [vmem:[%s219 + $0x38] sm:$0xff]
        %v264 = vld [vmem:[%s219 + $0x40] sm:$0xff]
        %v265 = vld [vmem:[%s219 + $0x48] sm:$0xff]
        %v266 = vld [vmem:[%s219 + $0x50] sm:$0xff]
        %v267 = vld [vmem:[%s219 + $0x58] sm:$0xff]
        %v268 = vld [vmem:[%s219 + $0x60] sm:$0xff]
        %v269 = vpack.c.bf16 %v257, %v256
        %v270 = vpack.c.bf16 %v259, %v258
        %v271 = vpack.c.bf16 %v261, %v260
        %v272 = vpack.c.bf16 %v263, %v262
        %v273 = vpack.c.bf16 %v265, %v264
        %v274 = vpack.c.bf16 %v267, %v266
        %v275 = vpack.c.bf16 %v268, %v268
        %v276 = vld [vmem:[%s1] sm:$0xf]
        %v277 = vld [vmem:[%s1 + $0x4] sm:$0xf]
        %v278 = vld [vmem:[%s1 + $0x8] sm:$0xf]
        %v279 = vld [vmem:[%s1 + $0xc] sm:$0xf]
        %v280 = vld [vmem:[%s1 + $0x10] sm:$0xf]
        %v281 = vld [vmem:[%s1 + $0x14] sm:$0xf]
        %v282 = vld [vmem:[%s1 + $0x18] sm:$0xf]
        %v283 = vld [vmem:[%s1 + $0x1c] sm:$0xf]
        %v284 = vld [vmem:[%s1 + $0x20] sm:$0xf]
        %v285 = vld [vmem:[%s1 + $0x24] sm:$0xf]
        %v286 = vld [vmem:[%s1 + $0x28] sm:$0xf]
        %v287 = vld [vmem:[%s1 + $0x2c] sm:$0xf]
        %v288 = vld [vmem:[%s1 + $0x30] sm:$0xf]
        %v289 = vld [vmem:[%s1 + $0x34] sm:$0xf]
        %v290 = vld [vmem:[%s1 + $0x38] sm:$0xf]
        %v291 = vld [vmem:[%s1 + $0x3c] sm:$0xf]
        %v292 = vld [vmem:[%s2] sm:$0x1]
        %v294 = vlaneseq
        %v295 = vshrl.u32 %v294, 7
        %v296 = vsub.s32 0, %v295
        %v297 = vrot.slane %v292, %v296
        %v315 = vunpack.c.l.b16 %v276
        %v316 = vunpack.c.l.b16 %v277
        %v317 = vunpack.c.l.b16 %v278
        %v318 = vunpack.c.l.b16 %v279
        %v319 = vunpack.c.l.b16 %v280
        %v320 = vunpack.c.l.b16 %v281
        %v321 = vunpack.c.l.b16 %v282
        %v322 = vunpack.c.l.b16 %v283
        %v323 = vunpack.c.l.b16 %v284
        %v324 = vunpack.c.l.b16 %v285
        %v325 = vunpack.c.l.b16 %v286
        %v326 = vunpack.c.l.b16 %v287
        %v327 = vunpack.c.l.b16 %v288
        %v328 = vunpack.c.l.b16 %v289
        %v329 = vunpack.c.l.b16 %v290
        %v330 = vunpack.c.l.b16 %v291
        %v331 = vpack.c.b16 %v316, %v315
        %v332 = vpack.c.b16 %v318, %v317
        %v333 = vpack.c.b16 %v320, %v319
        %v334 = vpack.c.b16 %v322, %v321
        %v335 = vpack.c.b16 %v324, %v323
        %v336 = vpack.c.b16 %v326, %v325
        %v337 = vpack.c.b16 %v328, %v327
        %v338 = vpack.c.b16 %v330, %v329
        %347 = vmatprep.subr.bf16.mxu0 0
        %348 = vmatpush1.bf16.msra.mxu0 %v338
        %349 = vmatprep.subr.bf16.mxu0 0
        %350 = vmatpush1.bf16.msra.mxu0 %v337
        %351 = vmatprep.subr.bf16.mxu0 0
        %352 = vmatpush1.bf16.msra.mxu0 %v336
        %353 = vmatprep.subr.bf16.mxu0 0
        %354 = vmatpush1.bf16.msra.mxu0 %v335
        %355 = vmatprep.subr.bf16.mxu0 0
        %356 = vmatpush1.bf16.msra.mxu0 %v334
        %357 = vmatprep.subr.bf16.mxu0 0
        %358 = vmatpush1.bf16.msra.mxu0 %v333
        %359 = vmatprep.subr.bf16.mxu0 0
        %360 = vmatpush1.bf16.msra.mxu0 %v332
        %361 = vmatprep.subr.bf16.mxu0 0
        %362 = vmatpush1.bf16.msra.mxu0 %v331
        %363 = vmatprep.subr.bf16.mxu0 0
        %364 = vmatpush2.bf16.msra.mxu0 0
        %365 = vmatprep.subr.bf16.mxu0 0
        %366 = vmatpush2.bf16.msra.mxu0 0
        %367 = vmatprep.subr.bf16.mxu0 0
        %368 = vmatpush2.bf16.msra.mxu0 0
        %369 = vmatprep.subr.bf16.mxu0 0
        %370 = vmatpush2.bf16.msra.mxu0 0
        %371 = vmatprep.subr.bf16.mxu0 0
        %372 = vmatpush2.bf16.msra.mxu0 0
        %373 = vmatprep.subr.bf16.mxu0 0
        %374 = vmatpush2.bf16.msra.mxu0 0
        %375 = vmatprep.subr.bf16.mxu0 0
        %376 = vmatpush2.bf16.msra.mxu0 0
        %377 = vmatprep.subr.bf16.mxu0 0
        %378 = vmatpush2.bf16.msra.mxu0 0
        %379 = vmatprep.mubr.bf16.mxu0 0
        %380 = vmatmul.mubr.bf16.gmra.mxu0 %v269
        %v381 = vpop.f32.mrf.mxu0
        %v382 = vadd.f32 %v297, %v381
        %v383 = vpop.f32.mrf.mxu0
        %v384 = vpop.f32.mrf.mxu0
        %v385 = vadd.f32 %v297, %v384
        %v386 = vpop.f32.mrf.mxu0
        %387 = vmatprep.mubr.bf16.mxu0 0
        %388 = vmatmul.mubr.bf16.gmra.mxu0 %v270
        %v389 = vpop.f32.mrf.mxu0
        %v390 = vadd.f32 %v297, %v389
        %v391 = vpop.f32.mrf.mxu0
        %v392 = vpop.f32.mrf.mxu0
        %v393 = vadd.f32 %v297, %v392
        %v394 = vpop.f32.mrf.mxu0
        %395 = vmatprep.mubr.bf16.mxu0 0
        %396 = vmatmul.mubr.bf16.gmra.mxu0 %v271
        %v397 = vpop.f32.mrf.mxu0
        %v398 = vadd.f32 %v297, %v397
        %v399 = vpop.f32.mrf.mxu0
        %v400 = vpop.f32.mrf.mxu0
        %v401 = vadd.f32 %v297, %v400
        %v402 = vpop.f32.mrf.mxu0
        %403 = vmatprep.mubr.bf16.mxu0 0
        %404 = vmatmul.mubr.bf16.gmra.mxu0 %v272
        %v405 = vpop.f32.mrf.mxu0
        %v406 = vadd.f32 %v297, %v405
        %v407 = vpop.f32.mrf.mxu0
        %v408 = vpop.f32.mrf.mxu0
        %v409 = vadd.f32 %v297, %v408
        %v410 = vpop.f32.mrf.mxu0
        %411 = vmatprep.mubr.bf16.mxu0 0
        %412 = vmatmul.mubr.bf16.gmra.mxu0 %v273
        %v413 = vpop.f32.mrf.mxu0
        %v414 = vadd.f32 %v297, %v413
        %v415 = vpop.f32.mrf.mxu0
        %v416 = vpop.f32.mrf.mxu0
        %v417 = vadd.f32 %v297, %v416
        %v418 = vpop.f32.mrf.mxu0
        %419 = vmatprep.mubr.bf16.mxu0 0
        %420 = vmatmul.mubr.bf16.gmra.mxu0 %v274
        %v421 = vpop.f32.mrf.mxu0
        %v422 = vadd.f32 %v297, %v421
        %v423 = vpop.f32.mrf.mxu0
        %v424 = vpop.f32.mrf.mxu0
        %v425 = vadd.f32 %v297, %v424
        %v426 = vpop.f32.mrf.mxu0
        %427 = vmatprep.mubr.bf16.mxu0 0
        %428 = vmatmul.mubr.bf16.gmra.mxu0 %v275
        %v429 = vpop.f32.mrf.mxu0
        %v430 = vadd.f32 %v297, %v429
        %v431 = vpop.f32.mrf.mxu0
        %v432 = vpop.f32.mrf.mxu0
        %v433 = vpop.f32.mrf.mxu0
        %434 = vdwg.mxu0
        %v435 = vsub.f32 0.0, %v382
        %v436 = vsub.f32 0.0, %v385
        %v437 = vsub.f32 0.0, %v390
        %v438 = vsub.f32 0.0, %v393
        %v439 = vsub.f32 0.0, %v398
        %v440 = vsub.f32 0.0, %v401
        %v441 = vsub.f32 0.0, %v406
        %v442 = vsub.f32 0.0, %v409
        %v443 = vsub.f32 0.0, %v414
        %v444 = vsub.f32 0.0, %v417
        %v445 = vsub.f32 0.0, %v422
        %v446 = vsub.f32 0.0, %v425
        %v447 = vsub.f32 0.0, %v430
        %v448 = vmul.f32 %v435, 1.442695
        %v449 = vpow.pop %v448
        %v450 = vmul.f32 %v436, 1.442695
        %v451 = vpow.pop %v450
        %v452 = vmul.f32 %v437, 1.442695
        %v453 = vpow.pop %v452
        %v454 = vmul.f32 %v438, 1.442695
        %v455 = vpow.pop %v454
        %v456 = vmul.f32 %v439, 1.442695
        %v457 = vpow.pop %v456
        %v458 = vmul.f32 %v440, 1.442695
        %v459 = vpow.pop %v458
        %v460 = vmul.f32 %v441, 1.442695
        %v461 = vpow.pop %v460
        %v462 = vmul.f32 %v442, 1.442695
        %v463 = vpow.pop %v462
        %v464 = vmul.f32 %v443, 1.442695
        %v465 = vpow.pop %v464
        %v466 = vmul.f32 %v444, 1.442695
        %v467 = vpow.pop %v466
        %v468 = vmul.f32 %v445, 1.442695
        %v469 = vpow.pop %v468
        %v470 = vmul.f32 %v446, 1.442695
        %v471 = vpow.pop %v470
        %v472 = vmul.f32 %v447, 1.442695
        %v473 = vpow.pop %v472
        %v474 = vadd.f32 %v449, 1.0
        %v475 = vadd.f32 %v451, 1.0
        %v476 = vadd.f32 %v453, 1.0
        %v477 = vadd.f32 %v455, 1.0
        %v478 = vadd.f32 %v457, 1.0
        %v479 = vadd.f32 %v459, 1.0
        %v480 = vadd.f32 %v461, 1.0
        %v481 = vadd.f32 %v463, 1.0
        %v482 = vadd.f32 %v465, 1.0
        %v483 = vadd.f32 %v467, 1.0
        %v484 = vadd.f32 %v469, 1.0
        %v485 = vadd.f32 %v471, 1.0
        %v486 = vadd.f32 %v473, 1.0
        %v487 = vrcp.pop %v474
        %v488 = vrcp.pop %v475
        %v489 = vrcp.pop %v476
        %v490 = vrcp.pop %v477
        %v491 = vrcp.pop %v478
        %v492 = vrcp.pop %v479
        %v493 = vrcp.pop %v480
        %v494 = vrcp.pop %v481
        %v495 = vrcp.pop %v482
        %v496 = vrcp.pop %v483
        %v497 = vrcp.pop %v484
        %v498 = vrcp.pop %v485
        %v499 = vrcp.pop %v486
        %v500 = vpack.c.bf16 %v488, %v487
        %v501 = vpack.c.bf16 %v490, %v489
        %v502 = vpack.c.bf16 %v492, %v491
        %v503 = vpack.c.bf16 %v494, %v493
        %v504 = vpack.c.bf16 %v496, %v495
        %v505 = vpack.c.bf16 %v498, %v497
        %v506 = vpack.c.bf16 %v499, %v499
        %v507 = vld [vmem:[%s3] sm:$0xf]
        %v508 = vld [vmem:[%s3 + $0x4] sm:$0xf]
        %v509 = vld [vmem:[%s3 + $0x8] sm:$0xf]
        %v510 = vld [vmem:[%s3 + $0xc] sm:$0xf]
        %v511 = vld [vmem:[%s3 + $0x10] sm:$0xf]
        %v512 = vld [vmem:[%s3 + $0x14] sm:$0xf]
        %v513 = vld [vmem:[%s3 + $0x18] sm:$0xf]
        %v514 = vld [vmem:[%s3 + $0x1c] sm:$0xf]
        %v515 = vld [vmem:[%s4] sm:$0x1]
        %v517 = vlaneseq
        %v518 = vshrl.u32 %v517, 7
        %v519 = vsub.s32 0, %v518
        %v520 = vrot.slane %v515, %v519
        %v530 = vunpack.c.l.b16 %v507
        %v531 = vunpack.c.l.b16 %v508
        %v532 = vunpack.c.l.b16 %v509
        %v533 = vunpack.c.l.b16 %v510
        %v534 = vunpack.c.l.b16 %v511
        %v535 = vunpack.c.l.b16 %v512
        %v536 = vunpack.c.l.b16 %v513
        %v537 = vunpack.c.l.b16 %v514
        %v538 = vpack.c.b16 %v531, %v530
        %v539 = vpack.c.b16 %v533, %v532
        %v540 = vpack.c.b16 %v535, %v534
        %v541 = vpack.c.b16 %v537, %v536
        %vm546 = vcmask 523264
        %v548 = vsel %vm546, %v500, 0
        %v551 = vsel %vm546, %v501, 0
        %v554 = vsel %vm546, %v502, 0
        %v557 = vsel %vm546, %v503, 0
        %v560 = vsel %vm546, %v504, 0
        %v563 = vsel %vm546, %v505, 0
        %v566 = vsel %vm546, %v506, 0
        %568 = vmatprep.subr.bf16.mxu0 0
        %569 = vmatpush1.bf16.msra.mxu0 0
        %570 = vmatprep.subr.bf16.mxu0 0
        %571 = vmatpush1.bf16.msra.mxu0 0
        %572 = vmatprep.subr.bf16.mxu0 0
        %573 = vmatpush1.bf16.msra.mxu0 0
        %574 = vmatprep.subr.bf16.mxu0 0
        %575 = vmatpush1.bf16.msra.mxu0 0
        %576 = vmatprep.subr.bf16.mxu0 0
        %577 = vmatpush1.bf16.msra.mxu0 %v541
        %578 = vmatprep.subr.bf16.mxu0 0
        %579 = vmatpush1.bf16.msra.mxu0 %v540
        %580 = vmatprep.subr.bf16.mxu0 0
        %581 = vmatpush1.bf16.msra.mxu0 %v539
        %582 = vmatprep.subr.bf16.mxu0 0
        %583 = vmatpush1.bf16.msra.mxu0 %v538
        %584 = vmatprep.subr.bf16.mxu0 0
        %585 = vmatpush2.bf16.msra.mxu0 0
        %586 = vmatprep.subr.bf16.mxu0 0
        %587 = vmatpush2.bf16.msra.mxu0 0
        %588 = vmatprep.subr.bf16.mxu0 0
        %589 = vmatpush2.bf16.msra.mxu0 0
        %590 = vmatprep.subr.bf16.mxu0 0
        %591 = vmatpush2.bf16.msra.mxu0 0
        %592 = vmatprep.subr.bf16.mxu0 0
        %593 = vmatpush2.bf16.msra.mxu0 0
        %594 = vmatprep.subr.bf16.mxu0 0
        %595 = vmatpush2.bf16.msra.mxu0 0
        %596 = vmatprep.subr.bf16.mxu0 0
        %597 = vmatpush2.bf16.msra.mxu0 0
        %598 = vmatprep.subr.bf16.mxu0 0
        %599 = vmatpush2.bf16.msra.mxu0 0
        %600 = vmatprep.mubr.bf16.mxu0 0
        %601 = vmatmul.mubr.bf16.gmra.mxu0 %v548
        %v602 = vpop.f32.mrf.mxu0
        %v603 = vadd.f32 %v520, %v602
        %v604 = vpop.f32.mrf.mxu0
        %v605 = vpop.f32.mrf.mxu0
        %v606 = vadd.f32 %v520, %v605
        %v607 = vpop.f32.mrf.mxu0
        %608 = vmatprep.mubr.bf16.mxu0 0
        %609 = vmatmul.mubr.bf16.gmra.mxu0 %v551
        %v610 = vpop.f32.mrf.mxu0
        %v611 = vadd.f32 %v520, %v610
        %v612 = vpop.f32.mrf.mxu0
        %v613 = vpop.f32.mrf.mxu0
        %v614 = vadd.f32 %v520, %v613
        %v615 = vpop.f32.mrf.mxu0
        %616 = vmatprep.mubr.bf16.mxu0 0
        %617 = vmatmul.mubr.bf16.gmra.mxu0 %v554
        %v618 = vpop.f32.mrf.mxu0
        %v619 = vadd.f32 %v520, %v618
        %v620 = vpop.f32.mrf.mxu0
        %v621 = vpop.f32.mrf.mxu0
        %v622 = vadd.f32 %v520, %v621
        %v623 = vpop.f32.mrf.mxu0
        %624 = vmatprep.mubr.bf16.mxu0 0
        %625 = vmatmul.mubr.bf16.gmra.mxu0 %v557
        %v626 = vpop.f32.mrf.mxu0
        %v627 = vadd.f32 %v520, %v626
        %v628 = vpop.f32.mrf.mxu0
        %v629 = vpop.f32.mrf.mxu0
        %v630 = vadd.f32 %v520, %v629
        %v631 = vpop.f32.mrf.mxu0
        %632 = vmatprep.mubr.bf16.mxu0 0
        %633 = vmatmul.mubr.bf16.gmra.mxu0 %v560
        %v634 = vpop.f32.mrf.mxu0
        %v635 = vadd.f32 %v520, %v634
        %v636 = vpop.f32.mrf.mxu0
        %v637 = vpop.f32.mrf.mxu0
        %v638 = vadd.f32 %v520, %v637
        %v639 = vpop.f32.mrf.mxu0
        %640 = vmatprep.mubr.bf16.mxu0 0
        %641 = vmatmul.mubr.bf16.gmra.mxu0 %v563
        %v642 = vpop.f32.mrf.mxu0
        %v643 = vadd.f32 %v520, %v642
        %v644 = vpop.f32.mrf.mxu0
        %v645 = vpop.f32.mrf.mxu0
        %v646 = vadd.f32 %v520, %v645
        %v647 = vpop.f32.mrf.mxu0
        %648 = vmatprep.mubr.bf16.mxu0 0
        %649 = vmatmul.mubr.bf16.gmra.mxu0 %v566
        %v650 = vpop.f32.mrf.mxu0
        %v651 = vadd.f32 %v520, %v650
        %v652 = vpop.f32.mrf.mxu0
        %v653 = vpop.f32.mrf.mxu0
        %v654 = vpop.f32.mrf.mxu0
        %655 = vdwg.mxu0
        %vm656 = vcmask 130048
        %657 = vst.msk [vmem:[%s244] sm:$0xff] %vm656, %v603
        %658 = vst.msk [vmem:[%s244 + $0x8] sm:$0xff] %vm656, %v606
        %659 = vst.msk [vmem:[%s244 + $0x10] sm:$0xff] %vm656, %v611
        %660 = vst.msk [vmem:[%s244 + $0x18] sm:$0xff] %vm656, %v614
        %661 = vst.msk [vmem:[%s244 + $0x20] sm:$0xff] %vm656, %v619
        %662 = vst.msk [vmem:[%s244 + $0x28] sm:$0xff] %vm656, %v622
        %663 = vst.msk [vmem:[%s244 + $0x30] sm:$0xff] %vm656, %v627
        %664 = vst.msk [vmem:[%s244 + $0x38] sm:$0xff] %vm656, %v630
        %665 = vst.msk [vmem:[%s244 + $0x40] sm:$0xff] %vm656, %v635
        %666 = vst.msk [vmem:[%s244 + $0x48] sm:$0xff] %vm656, %v638
        %667 = vst.msk [vmem:[%s244 + $0x50] sm:$0xff] %vm656, %v643
        %668 = vst.msk [vmem:[%s244 + $0x58] sm:$0xff] %vm656, %v646
        %669 = vst.msk [vmem:[%s244 + $0x60] sm:$0xff] %vm656, %v651
        %s670 = sand.u32 %s137, 1
        %s671 = sand.u32 %s137, 1
        %s672 = smul.addr %s671, 104
        %s673 = scalar_lea.vmem [#allocation4], %s672
        // Predicated region
        $region45: #{ffnn_forward.1} parent=39 // pred_check
          %p674 = pneg %p147
        $region46: #{ffnn_forward.1} parent=39 // pred_check_branch
          %676 = sbr.rel (%p674) target = $region48
        $region47: #{ffnn_forward.1} parent=39 // pred_region
          %s677 = smul.u32 13, %s19
          %s678 = ssub.s32 25, %s677
          %p679 = scmp.lt.s32.totalorder %s678, 13
          %s680 = scalar_select %p679, %s678, 13
          %s681 = smul.u32 128, %s680
          %p682 = scmp.ne.s32.totalorder 0, %s681
          %s683 = smul.addr %s677, 8
          %s684 = scalar_lea.vmem %s5, %s683
          // Predicated region
          $region49: #{ffnn_forward.1} parent=47 // pred_check
            %p685 = pneg %p682
          $region50: #{ffnn_forward.1} parent=47 // pred_check_branch
            %687 = sbr.rel (%p685) target = $region52
          $region51: #{ffnn_forward.1} parent=47 // pred_region
            // Predicated region
            $region53: #{ffnn_forward.1} parent=51 // pred_check
              _
            $region54: #{ffnn_forward.1} parent=51 // pred_check_branch
              %689 = sbr.rel (0) target = $region56
            $region55: #{ffnn_forward.1} parent=51 // pred_region
              // Predicated region
              $region75: #{ffnn_forward.1} parent=55 // pred_check
                _
              $region76: #{ffnn_forward.1} parent=55 // pred_check_branch
                %764 = sbr.rel (0) target = $region78
              $region77: #{ffnn_forward.1} parent=55 // pred_region
                %s765 = sdiv.u32.pop %s680, 13
                %s766 = srem.u32.pop %s680, 13
                // While loop
                $region79: #{ffnn_forward.1} parent=77 // loop_pre_header
                  _
                $region80: #{ffnn_forward.1} parent=77 // loop_header
                  %s768 = sphi 0, %s770
                  %p769 = scmp.ge.s32.totalorder %s768, %s765
                  %s773 = sphi 0, %s804
                  %s774 = sphi %s673, %s807
                  %s775 = sphi %s684, %s808
                $region81: #{ffnn_forward.1} parent=77 // loop_header_branch
                  %772 = sbr.rel (%p769) target = $region85
                $region82: #{ffnn_forward.1} parent=77 // loop_body
                  %v776 = vld [vmem:[%s774] sm:$0xff]
                  %777 = vst [vmem:[%s775] sm:$0xff] %v776
                  %v778 = vld [vmem:[%s774 + $0x8] sm:$0xff]
                  %779 = vst [vmem:[%s775 + $0x8] sm:$0xff] %v778
                  %v780 = vld [vmem:[%s774 + $0x10] sm:$0xff]
                  %781 = vst [vmem:[%s775 + $0x10] sm:$0xff] %v780
                  %v782 = vld [vmem:[%s774 + $0x18] sm:$0xff]
                  %783 = vst [vmem:[%s775 + $0x18] sm:$0xff] %v782
                  %v784 = vld [vmem:[%s774 + $0x20] sm:$0xff]
                  %785 = vst [vmem:[%s775 + $0x20] sm:$0xff] %v784
                  %v786 = vld [vmem:[%s774 + $0x28] sm:$0xff]
                  %787 = vst [vmem:[%s775 + $0x28] sm:$0xff] %v786
                  %v788 = vld [vmem:[%s774 + $0x30] sm:$0xff]
                  %789 = vst [vmem:[%s775 + $0x30] sm:$0xff] %v788
                  %v790 = vld [vmem:[%s774 + $0x38] sm:$0xff]
                  %791 = vst [vmem:[%s775 + $0x38] sm:$0xff] %v790
                  %v792 = vld [vmem:[%s774 + $0x40] sm:$0xff]
                  %793 = vst [vmem:[%s775 + $0x40] sm:$0xff] %v792
                  %v794 = vld [vmem:[%s774 + $0x48] sm:$0xff]
                  %795 = vst [vmem:[%s775 + $0x48] sm:$0xff] %v794
                  %v796 = vld [vmem:[%s774 + $0x50] sm:$0xff]
                  %797 = vst [vmem:[%s775 + $0x50] sm:$0xff] %v796
                  %v798 = vld [vmem:[%s774 + $0x58] sm:$0xff]
                  %799 = vst [vmem:[%s775 + $0x58] sm:$0xff] %v798
                  %v800 = vld [vmem:[%s774 + $0x60] sm:$0xff]
                  %801 = vst [vmem:[%s775 + $0x60] sm:$0xff] %v800
                  %s802 = sadd.s32 1, %s773
                  %p803 = scmp.ge.s32.totalorder %s802, %s765
                  %s804 = scalar_select %p803, 0, %s802
                  %s805 = smul.u32 %s804, 104
                  %s806 = smul.u32 %s804, 104
                  %s807 = scalar_lea.vmem %s673, %s805 [#allocation4]
                  %s808 = scalar_lea.vmem %s684, %s806
                $region83: #{ffnn_forward.1} parent=77 // loop_footer
                  %s770 = sadd.s32 %s768, 1
                $region84: #{ffnn_forward.1} parent=77 // loop_footer_branch
                  %767 = sbr.rel target = $region80
                $region85: #{ffnn_forward.1} parent=77 // loop_exit
                  _
                %s809 = sdiv.u32.pop %s680, 13
                %s810 = srem.u32.pop %s680, 13
                %s811 = smul.u32 %s809, 13
                %s812 = smul.u32 8, %s811
                %s813 = scalar_lea.vmem %s673, %s812 [#allocation4]
                %s814 = smul.u32 8, %s811
                %s815 = scalar_lea.vmem %s684, %s814
                // While loop
                $region86: #{ffnn_forward.1} parent=77 // loop_pre_header
                  _
                $region87: #{ffnn_forward.1} parent=77 // loop_header
                  %s817 = sphi 0, %s819
                  %p818 = scmp.ge.s32.totalorder %s817, %s810
                  %s822 = sphi 0, %s829
                  %s823 = sphi %s813, %s832
                  %s824 = sphi %s815, %s833
                $region88: #{ffnn_forward.1} parent=77 // loop_header_branch
                  %821 = sbr.rel (%p818) target = $region92
                $region89: #{ffnn_forward.1} parent=77 // loop_body
                  %v825 = vld [vmem:[%s823] sm:$0xff]
                  %826 = vst [vmem:[%s824] sm:$0xff] %v825
                  %s827 = sadd.s32 1, %s822
                  %p828 = scmp.ge.s32.totalorder %s827, %s810
                  %s829 = scalar_select %p828, 0, %s827
                  %s830 = smul.u32 %s829, 8
                  %s831 = smul.u32 %s829, 8
                  %s832 = scalar_lea.vmem %s813, %s830 [#allocation4]
                  %s833 = scalar_lea.vmem %s815, %s831
                $region90: #{ffnn_forward.1} parent=77 // loop_footer
                  %s819 = sadd.s32 %s817, 1
                $region91: #{ffnn_forward.1} parent=77 // loop_footer_branch
                  %816 = sbr.rel target = $region87
                $region92: #{ffnn_forward.1} parent=77 // loop_exit
                  _
              $region78: #{ffnn_forward.1} parent=55 // pred_fallthru
                _
              // Predicated region
              $region93: #{ffnn_forward.1} parent=55 // pred_check
                _
              $region94: #{ffnn_forward.1} parent=55 // pred_check_branch
                %835 = sbr.rel target = $region96
              $region95: #{ffnn_forward.1} parent=55 // pred_region
                _
              $region96: #{ffnn_forward.1} parent=55 // pred_fallthru
                _
            $region56: #{ffnn_forward.1} parent=51 // pred_fallthru
              _
            // Predicated region
            $region57: #{ffnn_forward.1} parent=51 // pred_check
              _
            $region58: #{ffnn_forward.1} parent=51 // pred_check_branch
              %691 = sbr.rel target = $region60
            $region59: #{ffnn_forward.1} parent=51 // pred_region
              %s693 = ssub.s32 256, 1
              %s694 = sdiv.u32.pop %s680, 13
              %s695 = srem.u32.pop %s680, 13
              // While loop
              $region61: #{ffnn_forward.1} parent=59 // loop_pre_header
                _
              $region62: #{ffnn_forward.1} parent=59 // loop_header
                %s697 = sphi 0, %s699
                %p698 = scmp.ge.s32.totalorder %s697, %s694
                %s702 = sphi 0, %s733
                %s703 = sphi %s673, %s736
                %s704 = sphi %s684, %s737
              $region63: #{ffnn_forward.1} parent=59 // loop_header_branch
                %701 = sbr.rel (%p698) target = $region67
              $region64: #{ffnn_forward.1} parent=59 // loop_body
                %v705 = vld [vmem:[%s703] sm:%s693]
                %706 = vst [vmem:[%s704] sm:%s693] %v705
                %v707 = vld [vmem:[%s703 + $0x8] sm:%s693]
                %708 = vst [vmem:[%s704 + $0x8] sm:%s693] %v707
                %v709 = vld [vmem:[%s703 + $0x10] sm:%s693]
                %710 = vst [vmem:[%s704 + $0x10] sm:%s693] %v709
                %v711 = vld [vmem:[%s703 + $0x18] sm:%s693]
                %712 = vst [vmem:[%s704 + $0x18] sm:%s693] %v711
                %v713 = vld [vmem:[%s703 + $0x20] sm:%s693]
                %714 = vst [vmem:[%s704 + $0x20] sm:%s693] %v713
                %v715 = vld [vmem:[%s703 + $0x28] sm:%s693]
                %716 = vst [vmem:[%s704 + $0x28] sm:%s693] %v715
                %v717 = vld [vmem:[%s703 + $0x30] sm:%s693]
                %718 = vst [vmem:[%s704 + $0x30] sm:%s693] %v717
                %v719 = vld [vmem:[%s703 + $0x38] sm:%s693]
                %720 = vst [vmem:[%s704 + $0x38] sm:%s693] %v719
                %v721 = vld [vmem:[%s703 + $0x40] sm:%s693]
                %722 = vst [vmem:[%s704 + $0x40] sm:%s693] %v721
                %v723 = vld [vmem:[%s703 + $0x48] sm:%s693]
                %724 = vst [vmem:[%s704 + $0x48] sm:%s693] %v723
                %v725 = vld [vmem:[%s703 + $0x50] sm:%s693]
                %726 = vst [vmem:[%s704 + $0x50] sm:%s693] %v725
                %v727 = vld [vmem:[%s703 + $0x58] sm:%s693]
                %728 = vst [vmem:[%s704 + $0x58] sm:%s693] %v727
                %v729 = vld [vmem:[%s703 + $0x60] sm:%s693]
                %730 = vst [vmem:[%s704 + $0x60] sm:%s693] %v729
                %s731 = sadd.s32 1, %s702
                %p732 = scmp.ge.s32.totalorder %s731, %s694
                %s733 = scalar_select %p732, 0, %s731
                %s734 = smul.u32 %s733, 104
                %s735 = smul.u32 %s733, 104
                %s736 = scalar_lea.vmem %s673, %s734 [#allocation4]
                %s737 = scalar_lea.vmem %s684, %s735
              $region65: #{ffnn_forward.1} parent=59 // loop_footer
                %s699 = sadd.s32 %s697, 1
              $region66: #{ffnn_forward.1} parent=59 // loop_footer_branch
                %696 = sbr.rel target = $region62
              $region67: #{ffnn_forward.1} parent=59 // loop_exit
                _
              %s738 = sdiv.u32.pop %s680, 13
              %s739 = srem.u32.pop %s680, 13
              %s740 = smul.u32 %s738, 13
              %s741 = smul.u32 8, %s740
              %s742 = scalar_lea.vmem %s673, %s741 [#allocation4]
              %s743 = smul.u32 8, %s740
              %s744 = scalar_lea.vmem %s684, %s743
              // While loop
              $region68: #{ffnn_forward.1} parent=59 // loop_pre_header
                _
              $region69: #{ffnn_forward.1} parent=59 // loop_header
                %s746 = sphi 0, %s748
                %p747 = scmp.ge.s32.totalorder %s746, %s739
                %s751 = sphi 0, %s758
                %s752 = sphi %s742, %s761
                %s753 = sphi %s744, %s762
              $region70: #{ffnn_forward.1} parent=59 // loop_header_branch
                %750 = sbr.rel (%p747) target = $region74
              $region71: #{ffnn_forward.1} parent=59 // loop_body
                %v754 = vld [vmem:[%s752] sm:%s693]
                %755 = vst [vmem:[%s753] sm:%s693] %v754
                %s756 = sadd.s32 1, %s751
                %p757 = scmp.ge.s32.totalorder %s756, %s739
                %s758 = scalar_select %p757, 0, %s756
                %s759 = smul.u32 %s758, 8
                %s760 = smul.u32 %s758, 8
                %s761 = scalar_lea.vmem %s742, %s759 [#allocation4]
                %s762 = scalar_lea.vmem %s744, %s760
              $region72: #{ffnn_forward.1} parent=59 // loop_footer
                %s748 = sadd.s32 %s746, 1
              $region73: #{ffnn_forward.1} parent=59 // loop_footer_branch
                %745 = sbr.rel target = $region69
              $region74: #{ffnn_forward.1} parent=59 // loop_exit
                _
            $region60: #{ffnn_forward.1} parent=51 // pred_fallthru
              _
          $region52: #{ffnn_forward.1} parent=47 // pred_fallthru
            _
          %836 = vnop
        $region48: #{ffnn_forward.1} parent=39 // pred_fallthru
          _
      $region40: #{ffnn_forward.1} parent=5 // pred_fallthru
        _
      %p837 = scmp.le.s32.totalorder 2, %s14
      // Predicated region
      $region97: #{ffnn_forward.1} parent=5 // pred_check
        %p838 = pneg %p837
      $region98: #{ffnn_forward.1} parent=5 // pred_check_branch
        %840 = sbr.rel (%p838) target = $region100
      $region99: #{ffnn_forward.1} parent=5 // pred_region
        %s841 = ssub.s32 %s14, 2
        // Predicated region
        $region101: #{ffnn_forward.1} parent=99 // pred_check
          %p842 = pneg %p153
        $region102: #{ffnn_forward.1} parent=99 // pred_check_branch
          %844 = sbr.rel (%p842) target = $region104
        $region103: #{ffnn_forward.1} parent=99 // pred_region
          %s845 = sand.u32 %s138, 1
          %s846 = sand.u32 %s138, 1
          %s847 = smul.addr %s846, 104
          %s848 = scalar_lea.vmem [#allocation4], %s847
        $region104: #{ffnn_forward.1} parent=99 // pred_fallthru
          _
      $region100: #{ffnn_forward.1} parent=5 // pred_fallthru
        _
    $region6: #{ffnn_forward.1} parent=1 // loop_footer
      %s18 = sadd.s32 1, %s14
    $region7: #{ffnn_forward.1} parent=1 // loop_footer_branch
      %13 = sbr.rel target = $region3
    $region8: #{ffnn_forward.1} parent=1 // loop_exit
      _
    %849 = vsyncpa [#allocation3], 1
    %s850 = scalar_lea.sflag [#allocation3], 1
    %851 = vsyncpa %s850, 1

</llo_original>
